<compile_context>
chip_gen: v7x
topology: tpu7x:2x2x1
jax: 0.10.0
libtpu: 0.0.40
codegen_flags: <defaults>
</compile_context>

<pallas_src>
import functools

import jax
import jax.numpy as jnp
from jax.experimental import pallas as pl
from jax.experimental.pallas import tpu as pltpu

EPS = 1e-5  # module default eps


def _round_up(a, m):
    return (a + m - 1) // m * m


def _ln_normed_scale_kernel(x_ref, w_ref, o_ref):
    x = x_ref[...].astype(jnp.float32)        # (TM, D)
    w = w_ref[...].astype(jnp.float32)        # (1, D)

    # scale = weight / ||weight||_2  (tiny reduction; EUP rsqrt, no divide).
    g = w * jax.lax.rsqrt(jnp.sum(w * w))

    # LayerNorm over the last dim, biased variance (unbiased=False).
    mean = jnp.mean(x, axis=-1, keepdims=True)                    # (TM, 1)
    centered = x - mean
    var = jnp.mean(centered * centered, axis=-1, keepdims=True)   # (TM, 1)
    inv_std = jax.lax.rsqrt(var + EPS)                            # EUP slot

    # No bias (module registers bias=None).
    o_ref[...] = (centered * inv_std * g).astype(o_ref.dtype)


@functools.partial(jax.jit, static_argnames=("block_rows",))
def layer_norm_normed_scale_only(x, weight, *, block_rows=256):
    """x: (..., D); weight: (D,). Normalizes over the last dim only.

    block_rows: upper bound on the row-tile size; the effective tile is
    additionally capped so the per-tile f32 working set stays ~4 MiB.
    """
    # TODO(synk): multi-axis normalized_shape would need the caller to flatten
    # the normalized trailing dims into a single last dim first.
    orig_shape = x.shape
    d_model = orig_shape[-1]
    x2 = x.reshape(-1, d_model)
    n_rows = x2.shape[0]

    # Effective row tile: multiple of 8 sublanes, capped by a ~4 MiB f32
    # working-set target (VMEM-safe even on v7x's 64 MiB), and no bigger than
    # the (padded) row count so tiny inputs aren't padded up to a huge tile.
    rows_cap = max(8, ((4 * 2**20) // (d_model * 4)) // 8 * 8)
    tm = min(block_rows, rows_cap, _round_up(n_rows, 8))
    tm = max(8, _round_up(tm, 8))
    n_pad = _round_up(n_rows, tm)
    if n_pad != n_rows:
        x2 = jnp.pad(x2, ((0, n_pad - n_rows), (0, 0)))
    grid = n_pad // tm

    w2 = weight.reshape(1, d_model)

    # Scoped-VMEM budget: double-buffered in/out tiles + f32 temporaries.
    # Explicit limit matters on v5e (16 MiB default scoped VMEM); the cap
    # keeps headroom under v7x's 64 MiB physical VMEM.
    tile_bytes = tm * d_model * x2.dtype.itemsize
    vmem_est = 4 * tile_bytes + 6 * tm * d_model * 4 + 4 * d_model * 4
    vmem_limit = int(min(max(vmem_est, 16 * 2**20), 48 * 2**20))

    out = pl.pallas_call(
        _ln_normed_scale_kernel,
        out_shape=jax.ShapeDtypeStruct((n_pad, d_model), x.dtype),
        grid_spec=pltpu.PrefetchScalarGridSpec(
            num_scalar_prefetch=0,
            grid=(grid,),
            in_specs=[
                pl.BlockSpec((tm, d_model), lambda i: (i, 0)),
                pl.BlockSpec((1, d_model), lambda i: (0, 0)),
            ],
            out_specs=pl.BlockSpec((tm, d_model), lambda i: (i, 0)),
        ),
        compiler_params=pltpu.CompilerParams(
            dimension_semantics=("parallel",),   # shards rows across TCs on v7x
            vmem_limit_bytes=vmem_limit,
        ),
    )(x2, w2)

    if n_pad != n_rows:
        out = out[:n_rows]
    return out.reshape(orig_shape)


def _reference(x, weight, eps=EPS):
    """Pure-JAX reference matching the PyTorch forward."""
    w = weight / jnp.linalg.norm(weight)
    mean = jnp.mean(x, axis=-1, keepdims=True)
    var = jnp.mean((x - mean) ** 2, axis=-1, keepdims=True)
    return (x - mean) / jnp.sqrt(var + eps) * w


if __name__ == "__main__":
    batch, seq, d_model = 2, 8, 128   # lane-dense last dim (multiple of 128)
    key = jax.random.PRNGKey(0)
    kx, kw = jax.random.split(key)
    x = jax.random.normal(kx, (batch, seq, d_model), dtype=jnp.float32)
    # Module init is ones_(weight); perturb deterministically so the
    # weight / ||weight|| path is exercised with a non-trivial scale vector.
    weight = 1.0 + 0.1 * jax.random.normal(kw, (d_model,), dtype=jnp.float32)

    out = layer_norm_normed_scale_only(x, weight, block_rows=256)
    out = jax.block_until_ready(out)

    ref = _reference(x, weight)
    assert out.shape == x.shape
    assert jnp.allclose(out, ref, atol=1e-5, rtol=1e-5), "mismatch vs reference"
    print("KERNEL_OK")
</pallas_src>

<mosaic_0001>
module attributes {stable_mosaic.version = 11 : i64} {
  func.func @_ln_normed_scale_kernel(%arg0: i32, %arg1: memref<16x128xf32, #tpu.memory_space<vmem>>, %arg2: memref<1x128xf32, #tpu.memory_space<vmem>>, %arg3: memref<16x128xf32, #tpu.memory_space<vmem>>) attributes {dimension_semantics = [#tpu.dimension_semantics<parallel>], iteration_bounds = array<i64: 1>, scalar_prefetch = 0 : i64, scratch_operands = 0 : i64, tpu.core_type = #tpu.core_type<tc>, window_params = [{transform_indices = @transform_0, window_bounds = array<i64: 16, 128>}, {pipeline_mode = #tpu.pipeline_mode<synchronous>, transform_indices = @transform_1, window_bounds = array<i64: 1, 128>}, {transform_indices = @transform_2, window_bounds = array<i64: 16, 128>}]} {
    %c0 = arith.constant 0 : index
    %c0_0 = arith.constant 0 : index
    %0 = vector.load %arg1[%c0, %c0_0] : memref<16x128xf32, #tpu.memory_space<vmem>>, vector<16x128xf32>
    %c0_1 = arith.constant 0 : index
    %c0_2 = arith.constant 0 : index
    %1 = vector.load %arg2[%c0_1, %c0_2] : memref<1x128xf32, #tpu.memory_space<vmem>>, vector<1x128xf32>
    %2 = arith.mulf %1, %1 : vector<1x128xf32>
    %3 = vector.shape_cast %2 : vector<1x128xf32> to vector<1x1x128xf32>
    %cst = arith.constant dense<0.000000e+00> : vector<1xf32>
    %4 = vector.multi_reduction <add>, %3, %cst [1, 2] : vector<1x1x128xf32> to vector<1xf32>
    %5 = vector.shape_cast %4 : vector<1xf32> to vector<1x1x1xf32>
    %6 = vector.extract %5[0, 0, 0] : f32 from vector<1x1x1xf32>
    %7 = math.rsqrt %6 : f32
    %8 = vector.broadcast %7 : f32 to vector<1x128xf32>
    %9 = arith.mulf %1, %8 : vector<1x128xf32>
    %cst_3 = arith.constant dense<0.000000e+00> : vector<16xf32>
    %10 = vector.multi_reduction <add>, %0, %cst_3 [1] : vector<16x128xf32> to vector<16xf32>
    %11 = vector.shape_cast %10 : vector<16xf32> to vector<16x1xf32>
    %cst_4 = arith.constant 1.280000e+02 : f32
    %12 = vector.broadcast %cst_4 : f32 to vector<16x1xf32>
    %13 = arith.divf %11, %12 : vector<16x1xf32>
    %14 = vector.broadcast %13 : vector<16x1xf32> to vector<16x128xf32>
    %15 = arith.subf %0, %14 : vector<16x128xf32>
    %16 = arith.mulf %15, %15 : vector<16x128xf32>
    %cst_5 = arith.constant dense<0.000000e+00> : vector<16xf32>
    %17 = vector.multi_reduction <add>, %16, %cst_5 [1] : vector<16x128xf32> to vector<16xf32>
    %18 = vector.shape_cast %17 : vector<16xf32> to vector<16x1xf32>
    %cst_6 = arith.constant 1.280000e+02 : f32
    %19 = vector.broadcast %cst_6 : f32 to vector<16x1xf32>
    %20 = arith.divf %18, %19 : vector<16x1xf32>
    %cst_7 = arith.constant 9.99999974E-6 : f32
    %21 = vector.broadcast %cst_7 : f32 to vector<16x1xf32>
    %22 = arith.addf %20, %21 : vector<16x1xf32>
    %23 = math.rsqrt %22 : vector<16x1xf32>
    %24 = vector.broadcast %23 : vector<16x1xf32> to vector<16x128xf32>
    %25 = arith.mulf %15, %24 : vector<16x128xf32>
    %26 = vector.broadcast %9 : vector<1x128xf32> to vector<16x128xf32>
    %27 = arith.mulf %25, %26 : vector<16x128xf32>
    %c0_8 = arith.constant 0 : index
    %c0_9 = arith.constant 0 : index
    %28 = vector.load %arg3[%c0_8, %c0_9] : memref<16x128xf32, #tpu.memory_space<vmem>>, vector<16x128xf32>
    tpu.vector_store %arg3[%c0_8, %c0_9], %27 {strides = array<i32>} : memref<16x128xf32, #tpu.memory_space<vmem>>, vector<16x128xf32>,
    return
  }
  func.func @transform_0(%arg0: i32) -> (i32, i32) {
    %c0_i32 = arith.constant 0 : i32
    %c0_i32_0 = arith.constant 0 : i32
    return %arg0, %c0_i32 : i32, i32
  }
  func.func @transform_1(%arg0: i32) -> (i32, i32) {
    %c0_i32 = arith.constant 0 : i32
    %c0_i32_0 = arith.constant 0 : i32
    %c0_i32_1 = arith.constant 0 : i32
    return %c0_i32, %c0_i32_0 : i32, i32
  }
  func.func @transform_2(%arg0: i32) -> (i32, i32) {
    %c0_i32 = arith.constant 0 : i32
    %c0_i32_0 = arith.constant 0 : i32
    return %arg0, %c0_i32 : i32, i32
  }
}

</mosaic_0001>

<llo_original>
// kernel: layer_norm_normed_scale_only.1
$region0: #{layer_norm_normed_scale_only.1}
  #allocation0 [shape = 'u32[]', space=smem, size = 0x4, offset = 0x4, fixed_abs, tag = 'smem constant byte address 0x4 - core index']
  #allocation1 [shape = 'u32[144,128]{1,0:T(1,128)}', space=vmem, size = 0x12000, scoped, tag = 'internal scratch']
  %s0 = inlined_call_operand.hbm [shape: f32[16,128], index: 0, kind: input, shape index: {}]
  %s1 = inlined_call_operand.vmem [shape: f32[1,128], index: 1, kind: input, shape index: {}]
  %s2 = inlined_call_operand.hbm [shape: f32[16,128], index: 2, kind: output, shape index: {}]
  %s3 = sld [smem:[#allocation0]]
  $region22: #{layer_norm_normed_scale_only.1} parent=0
    _
  %s5 = ssub.s32 1, %s3
  %s6 = scalar_select 0, %s5, %s3
  $region1: #{layer_norm_normed_scale_only.1} parent=0
    #allocation2 [shape = 'u8[8192]{0}', space=vmem, size = 0x2000, scoped, tag = 'input window, operand 0, single buffered']
    #allocation3 [shape = 's32[1]{0}', space=sflag, size = 0x4, scoped, tag = 'scoped memory for layer_norm_normed_scale_only.1']
    #allocation4 [shape = 's32[1]{0}', space=sflag, size = 0x4, scoped, tag = 'scoped memory for layer_norm_normed_scale_only.1']
    #allocation5 [shape = 'u8[8192]{0}', space=vmem, size = 0x2000, scoped, tag = 'output window, operand 0, single buffered']
    %7 = vsyncpa [#allocation3], 0
    %8 = vsyncpa [#allocation4], 0
    // Predicated region
    $region2: #{layer_norm_normed_scale_only.1} parent=1 // pred_check
      _
    $region3: #{layer_norm_normed_scale_only.1} parent=1 // pred_check_branch
      %10 = sbr.rel (0) target = $region5
    $region4: #{layer_norm_normed_scale_only.1} parent=1 // pred_region
      %s12 = ssub.s32 256, 256
      %13 = vsyncadd [#allocation3], %s12
      %s14 = sshll.u32 [#allocation2], 4
      %s15 = int_to_ptr.vmem [resolvable:$true] %s14
      %20 = dma.hbm_to_vmem [thread:$0]  %s0, 256, %s15, [#allocation3], 128, 128, 8
    $region5: #{layer_norm_normed_scale_only.1} parent=1 // pred_fallthru
      _
    // Predicated region
    $region6: #{layer_norm_normed_scale_only.1} parent=1 // pred_check
      _
    $region7: #{layer_norm_normed_scale_only.1} parent=1 // pred_check_branch
      %22 = sbr.rel (0) target = $region9
    $region8: #{layer_norm_normed_scale_only.1} parent=1 // pred_region
      _
    $region9: #{layer_norm_normed_scale_only.1} parent=1 // pred_fallthru
      _
    // Predicated region
    $region10: #{layer_norm_normed_scale_only.1} parent=1 // pred_check
      _
    $region11: #{layer_norm_normed_scale_only.1} parent=1 // pred_check_branch
      %24 = sbr.rel (0) target = $region13
    $region12: #{layer_norm_normed_scale_only.1} parent=1 // pred_region
      %25 = dma.done [#allocation3], 256
    $region13: #{layer_norm_normed_scale_only.1} parent=1 // pred_fallthru
      _
    %v26 = vld [vmem:[#allocation2] sm:$0xff]
    %v27 = vld [vmem:[#allocation2 + $0x8] sm:$0xff]
    %v28 = vld [vmem:[%s1] sm:$0x1]
    %v29 = vmul.f32 %v28, %v28
    %vm30 = vcmask 1040384
    %v31 = vsel %vm30, %v29, 0.0
    %32 = vadd.xlane.f32.xlu0 %v31
    %v33 = vpop.xlane.xlu0 %32
    %v34 = vrot.slane %v33, 4
    %v35 = vadd.f32 %v33, %v34
    %v36 = vrot.slane %v35, 2
    %v37 = vadd.f32 %v35, %v36
    %v38 = vrot.slane %v37, 1
    %v39 = vadd.f32 %v37, %v38
    %s40 = vtos %v39
    %v41 = vstv %s40
    %v42 = vrsqrt.pop %v41
    %s43 = vtos %v42
    %v44 = vstv %s43
    %v45 = vmul.f32 %v28, %v44
    %46 = vadd.xlane.f32.xlu0 %v26
    %v47 = vpop.xlane.xlu0 %46
    %48 = vadd.xlane.f32.xlu0 %v27
    %v49 = vpop.xlane.xlu0 %48
    %v50 = vrcp.pop 128.0
    %v51 = vmul.f32 %v47, %v50
    %v52 = vmul.f32 %v49, %v50
    %v53 = vsub.f32 %v26, %v51
    %v54 = vsub.f32 %v27, %v52
    %v55 = vmul.f32 %v53, %v53
    %v56 = vmul.f32 %v54, %v54
    %57 = vadd.xlane.f32.xlu0 %v55
    %v58 = vpop.xlane.xlu0 %57
    %59 = vadd.xlane.f32.xlu0 %v56
    %v60 = vpop.xlane.xlu0 %59
    %v61 = vmul.f32 %v58, %v50
    %v62 = vmul.f32 %v60, %v50
    %v63 = vadd.f32 %v61, 1e-05
    %v64 = vadd.f32 %v62, 1e-05
    %v65 = vrsqrt.pop %v63
    %v66 = vrsqrt.pop %v64
    %v67 = vmul.f32 %v53, %v65
    %v68 = vmul.f32 %v54, %v66
    %v70 = vlaneseq
    %v71 = vshrl.u32 %v70, 7
    %v72 = vsub.s32 0, %v71
    %v73 = vrot.slane %v45, %v72
    %v75 = vmul.f32 %v67, %v73
    %v76 = vmul.f32 %v68, %v73
    %77 = vst [vmem:[#allocation5] sm:$0xff] %v75
    %78 = vst [vmem:[#allocation5 + $0x8] sm:$0xff] %v76
    // Predicated region
    $region14: #{layer_norm_normed_scale_only.1} parent=1 // pred_check
      _
    $region15: #{layer_norm_normed_scale_only.1} parent=1 // pred_check_branch
      %80 = sbr.rel (0) target = $region17
    $region16: #{layer_norm_normed_scale_only.1} parent=1 // pred_region
      %s82 = ssub.s32 256, 256
      %83 = vsyncadd [#allocation4], %s82
      %s84 = sshll.u32 [#allocation5], 4
      %s85 = int_to_ptr.vmem [resolvable:$true] %s84
      %90 = dma.vmem_to_hbm [thread:$0]  %s85, 256, %s2, [#allocation4], 128, 128, 8
    $region17: #{layer_norm_normed_scale_only.1} parent=1 // pred_fallthru
      _
    // Predicated region
    $region18: #{layer_norm_normed_scale_only.1} parent=1 // pred_check
      _
    $region19: #{layer_norm_normed_scale_only.1} parent=1 // pred_check_branch
      %92 = sbr.rel (0) target = $region21
    $region20: #{layer_norm_normed_scale_only.1} parent=1 // pred_region
      %93 = dma.done [#allocation4], 256
    $region21: #{layer_norm_normed_scale_only.1} parent=1 // pred_fallthru
      _
    %94 = vsyncpa [#allocation3], 1
    %95 = vsyncpa [#allocation4], 1

</llo_original>
